<compile_context>
chip_gen: v7x
topology: tpu7x:2x2x1
jax: 0.10.0
libtpu: 0.0.40
codegen_flags: <defaults>
</compile_context>

<pallas_src>
import jax
import jax.numpy as jnp
from jax.experimental import pallas as pl
from jax.experimental.pallas import tpu as pltpu

INPUT_DIM = 768  # fixed by the module: nn.RNN(768, hidden_size)


def classifier_head_kernel(x_ref, wih_ref, b_ref, whh_ref, wlin_ref, blin_ref, out_ref):
    # x_ref:    (T*B, 768)  time-major flattened input
    # wih_ref:  (768, H)
    # b_ref:    (1, H)      == b_ih + b_hh (precombined)
    # whh_ref:  (H, H)
    # wlin_ref: (T*H, C)    blin_ref: (1, C)
    # out_ref:  (B, C)
    TB, _ = x_ref.shape
    H = whh_ref.shape[0]
    B, _ = out_ref.shape
    T = TB // B

    # One big MXU matmul for the input projection; both RNN biases folded in once.
    xproj = (jnp.dot(x_ref[...], wih_ref[...], preferred_element_type=jnp.float32)
             + b_ref[...])                                        # (T*B, H)

    whh = whh_ref[...]                                            # (H, H), loaded once

    # Serial tanh recurrence. h lives in vregs (one (B, H) tile) across the unrolled loop.
    # t = 0: h_{-1} == 0, so the recurrent term vanishes.
    h = jnp.tanh(xproj[0:B, :])
    hs = [h]
    for t in range(1, T):
        h = jnp.tanh(xproj[t * B:(t + 1) * B, :]
                     + jnp.dot(h, whh, preferred_element_type=jnp.float32))
        hs.append(h)

    # concat_t(h_t) along features == PyTorch reshape(B, -1) of the (B, T, H) outputs.
    feats = jnp.concatenate(hs, axis=-1)                          # (B, T*H)

    # Single classifier matmul + bias epilogue, one store to the output.
    out_ref[...] = (jnp.dot(feats, wlin_ref[...],
                            preferred_element_type=jnp.float32)
                    + blin_ref[...])


def classifier_head(x, w_ih, b_ih, w_hh, b_hh, w_lin, b_lin):
    """x: (B, T, 768) f32. Weights in PyTorch layout:
       w_ih: (H, 768), w_hh: (H, H), b_ih/b_hh: (H,),
       w_lin: (C, T*H), b_lin: (C,).
    """
    B, T, D = x.shape
    assert D == INPUT_DIM
    H = w_hh.shape[0]
    C = w_lin.shape[0]

    # Glue (cheap XLA ops): time-major flatten of x, pre-transpose weights to (in, out),
    # combine the two RNN biases, make biases 2-D for TPU layout.
    x_tm = jnp.transpose(x, (1, 0, 2)).reshape(T * B, D).astype(jnp.float32)  # (T*B, 768)
    wih_t = jnp.transpose(w_ih).astype(jnp.float32)                           # (768, H)
    whh_t = jnp.transpose(w_hh).astype(jnp.float32)                           # (H, H)
    wlin_t = jnp.transpose(w_lin).astype(jnp.float32)                         # (T*H, C)
    b_comb = (b_ih + b_hh).reshape(1, H).astype(jnp.float32)                  # (1, H)
    blin2 = b_lin.reshape(1, C).astype(jnp.float32)                           # (1, C)

    # Everything (~0.3 MiB) trivially fits VMEM on v5e/v6e/v7x; single invocation,
    # no grid (the serial RNN chain would not shrink by sharding B=2 across cores).
    vmem = pl.BlockSpec(memory_space=pltpu.MemorySpace.VMEM)
    return pl.pallas_call(
        classifier_head_kernel,
        out_shape=jax.ShapeDtypeStruct((B, C), jnp.float32),
        in_specs=[vmem] * 6,
        out_specs=vmem,
    )(x_tm, wih_t, b_comb, whh_t, wlin_t, blin2)


def reference(x, w_ih, b_ih, w_hh, b_hh, w_lin, b_lin):
    """Pure-JAX reference replicating the PyTorch forward."""
    B, T, D = x.shape
    H = w_hh.shape[0]
    h = jnp.zeros((B, H), jnp.float32)
    hs = []
    for t in range(T):
        h = jnp.tanh(x[:, t, :] @ w_ih.T + b_ih + h @ w_hh.T + b_hh)
        hs.append(h)
    feats = jnp.concatenate(hs, axis=-1)           # (B, T*H) == reshape(B, -1)
    return feats @ w_lin.T + b_lin


if __name__ == "__main__":
    B, T, H, C = 2, 8, 32, 10   # batch=2, seq_length=8, hidden=32, num_classes=10
    key = jax.random.PRNGKey(0)
    ks = jax.random.split(key, 7)
    bound = 1.0 / jnp.sqrt(H)   # PyTorch default init scale for nn.RNN / nn.Linear-ish

    x = jax.random.normal(ks[0], (B, T, INPUT_DIM), jnp.float32)
    w_ih = jax.random.uniform(ks[1], (H, INPUT_DIM), jnp.float32, -bound, bound)
    w_hh = jax.random.uniform(ks[2], (H, H), jnp.float32, -bound, bound)
    b_ih = jax.random.uniform(ks[3], (H,), jnp.float32, -bound, bound)
    b_hh = jax.random.uniform(ks[4], (H,), jnp.float32, -bound, bound)
    w_lin = jax.random.uniform(ks[5], (C, H * T), jnp.float32, -bound, bound)
    b_lin = jax.random.uniform(ks[6], (C,), jnp.float32, -bound, bound)

    out = classifier_head(x, w_ih, b_ih, w_hh, b_hh, w_lin, b_lin)
    out = jax.block_until_ready(out)

    ref = reference(x, w_ih, b_ih, w_hh, b_hh, w_lin, b_lin)
    assert out.shape == (B, C)
    assert jnp.allclose(out, ref, atol=1e-4, rtol=1e-4), "mismatch vs JAX reference"

    print("KERNEL_OK")
</pallas_src>

<mosaic_0001>
module attributes {stable_mosaic.version = 11 : i64} {
  func.func @classifier_head_kernel(%arg0: memref<16x768xf32, #tpu.memory_space<vmem>>, %arg1: memref<768x32xf32, #tpu.memory_space<vmem>>, %arg2: memref<1x32xf32, #tpu.memory_space<vmem>>, %arg3: memref<32x32xf32, #tpu.memory_space<vmem>>, %arg4: memref<256x10xf32, #tpu.memory_space<vmem>>, %arg5: memref<1x10xf32, #tpu.memory_space<vmem>>, %arg6: memref<2x10xf32, #tpu.memory_space<vmem>>) attributes {dimension_semantics = [], scalar_prefetch = 0 : i64, scratch_operands = 0 : i64, tpu.core_type = #tpu.core_type<tc>} {
    %c0 = arith.constant 0 : index
    %c0_0 = arith.constant 0 : index
    %0 = vector.load %arg0[%c0, %c0_0] : memref<16x768xf32, #tpu.memory_space<vmem>>, vector<16x768xf32>
    %c0_1 = arith.constant 0 : index
    %c0_2 = arith.constant 0 : index
    %1 = vector.load %arg1[%c0_1, %c0_2] : memref<768x32xf32, #tpu.memory_space<vmem>>, vector<768x32xf32>
    %cst = arith.constant dense<0.000000e+00> : vector<16x32xf32>
    %2 = tpu.matmul %0, %1, %cst {dimension_numbers = #tpu.dot_dimension_numbers<[1], [0], [0], [1], [0, 0, 1, 1], [], []>} : vector<16x768xf32>, vector<768x32xf32>, vector<16x32xf32> -> vector<16x32xf32>
    %c0_3 = arith.constant 0 : index
    %c0_4 = arith.constant 0 : index
    %3 = vector.load %arg2[%c0_3, %c0_4] : memref<1x32xf32, #tpu.memory_space<vmem>>, vector<1x32xf32>
    %4 = vector.broadcast %3 : vector<1x32xf32> to vector<16x32xf32>
    %5 = arith.addf %2, %4 : vector<16x32xf32>
    %c0_5 = arith.constant 0 : index
    %c0_6 = arith.constant 0 : index
    %6 = vector.load %arg3[%c0_5, %c0_6] : memref<32x32xf32, #tpu.memory_space<vmem>>, vector<32x32xf32>
    %7 = vector.extract_strided_slice %5 {offsets = [0, 0], sizes = [2, 32], strides = [1, 1]} : vector<16x32xf32> to vector<2x32xf32>
    %8 = math.tanh %7 : vector<2x32xf32>
    %9 = vector.extract_strided_slice %5 {offsets = [2, 0], sizes = [2, 32], strides = [1, 1]} : vector<16x32xf32> to vector<2x32xf32>
    %cst_7 = arith.constant dense<0.000000e+00> : vector<2x32xf32>
    %10 = tpu.matmul %8, %6, %cst_7 {dimension_numbers = #tpu.dot_dimension_numbers<[1], [0], [0], [1], [0, 0, 1, 1], [], []>} : vector<2x32xf32>, vector<32x32xf32>, vector<2x32xf32> -> vector<2x32xf32>
    %11 = arith.addf %9, %10 : vector<2x32xf32>
    %12 = math.tanh %11 : vector<2x32xf32>
    %13 = vector.extract_strided_slice %5 {offsets = [4, 0], sizes = [2, 32], strides = [1, 1]} : vector<16x32xf32> to vector<2x32xf32>
    %cst_8 = arith.constant dense<0.000000e+00> : vector<2x32xf32>
    %14 = tpu.matmul %12, %6, %cst_8 {dimension_numbers = #tpu.dot_dimension_numbers<[1], [0], [0], [1], [0, 0, 1, 1], [], []>} : vector<2x32xf32>, vector<32x32xf32>, vector<2x32xf32> -> vector<2x32xf32>
    %15 = arith.addf %13, %14 : vector<2x32xf32>
    %16 = math.tanh %15 : vector<2x32xf32>
    %17 = vector.extract_strided_slice %5 {offsets = [6, 0], sizes = [2, 32], strides = [1, 1]} : vector<16x32xf32> to vector<2x32xf32>
    %cst_9 = arith.constant dense<0.000000e+00> : vector<2x32xf32>
    %18 = tpu.matmul %16, %6, %cst_9 {dimension_numbers = #tpu.dot_dimension_numbers<[1], [0], [0], [1], [0, 0, 1, 1], [], []>} : vector<2x32xf32>, vector<32x32xf32>, vector<2x32xf32> -> vector<2x32xf32>
    %19 = arith.addf %17, %18 : vector<2x32xf32>
    %20 = math.tanh %19 : vector<2x32xf32>
    %21 = vector.extract_strided_slice %5 {offsets = [8, 0], sizes = [2, 32], strides = [1, 1]} : vector<16x32xf32> to vector<2x32xf32>
    %cst_10 = arith.constant dense<0.000000e+00> : vector<2x32xf32>
    %22 = tpu.matmul %20, %6, %cst_10 {dimension_numbers = #tpu.dot_dimension_numbers<[1], [0], [0], [1], [0, 0, 1, 1], [], []>} : vector<2x32xf32>, vector<32x32xf32>, vector<2x32xf32> -> vector<2x32xf32>
    %23 = arith.addf %21, %22 : vector<2x32xf32>
    %24 = math.tanh %23 : vector<2x32xf32>
    %25 = vector.extract_strided_slice %5 {offsets = [10, 0], sizes = [2, 32], strides = [1, 1]} : vector<16x32xf32> to vector<2x32xf32>
    %cst_11 = arith.constant dense<0.000000e+00> : vector<2x32xf32>
    %26 = tpu.matmul %24, %6, %cst_11 {dimension_numbers = #tpu.dot_dimension_numbers<[1], [0], [0], [1], [0, 0, 1, 1], [], []>} : vector<2x32xf32>, vector<32x32xf32>, vector<2x32xf32> -> vector<2x32xf32>
    %27 = arith.addf %25, %26 : vector<2x32xf32>
    %28 = math.tanh %27 : vector<2x32xf32>
    %29 = vector.extract_strided_slice %5 {offsets = [12, 0], sizes = [2, 32], strides = [1, 1]} : vector<16x32xf32> to vector<2x32xf32>
    %cst_12 = arith.constant dense<0.000000e+00> : vector<2x32xf32>
    %30 = tpu.matmul %28, %6, %cst_12 {dimension_numbers = #tpu.dot_dimension_numbers<[1], [0], [0], [1], [0, 0, 1, 1], [], []>} : vector<2x32xf32>, vector<32x32xf32>, vector<2x32xf32> -> vector<2x32xf32>
    %31 = arith.addf %29, %30 : vector<2x32xf32>
    %32 = math.tanh %31 : vector<2x32xf32>
    %33 = vector.extract_strided_slice %5 {offsets = [14, 0], sizes = [2, 32], strides = [1, 1]} : vector<16x32xf32> to vector<2x32xf32>
    %cst_13 = arith.constant dense<0.000000e+00> : vector<2x32xf32>
    %34 = tpu.matmul %32, %6, %cst_13 {dimension_numbers = #tpu.dot_dimension_numbers<[1], [0], [0], [1], [0, 0, 1, 1], [], []>} : vector<2x32xf32>, vector<32x32xf32>, vector<2x32xf32> -> vector<2x32xf32>
    %35 = arith.addf %33, %34 : vector<2x32xf32>
    %36 = math.tanh %35 : vector<2x32xf32>
    %37 = tpu.concatenate %8, %12, %16, %20, %24, %28, %32, %36 in 1 : vector<2x32xf32>, vector<2x32xf32>, vector<2x32xf32>, vector<2x32xf32>, vector<2x32xf32>, vector<2x32xf32>, vector<2x32xf32>, vector<2x32xf32> -> vector<2x256xf32>
    %c0_14 = arith.constant 0 : index
    %c0_15 = arith.constant 0 : index
    %38 = vector.load %arg4[%c0_14, %c0_15] : memref<256x10xf32, #tpu.memory_space<vmem>>, vector<256x10xf32>
    %cst_16 = arith.constant dense<0.000000e+00> : vector<2x10xf32>
    %39 = tpu.matmul %37, %38, %cst_16 {dimension_numbers = #tpu.dot_dimension_numbers<[1], [0], [0], [1], [0, 0, 1, 1], [], []>} : vector<2x256xf32>, vector<256x10xf32>, vector<2x10xf32> -> vector<2x10xf32>
    %c0_17 = arith.constant 0 : index
    %c0_18 = arith.constant 0 : index
    %40 = vector.load %arg5[%c0_17, %c0_18] : memref<1x10xf32, #tpu.memory_space<vmem>>, vector<1x10xf32>
    %41 = vector.broadcast %40 : vector<1x10xf32> to vector<2x10xf32>
    %42 = arith.addf %39, %41 : vector<2x10xf32>
    %c0_19 = arith.constant 0 : index
    %c0_20 = arith.constant 0 : index
    %43 = vector.load %arg6[%c0_19, %c0_20] : memref<2x10xf32, #tpu.memory_space<vmem>>, vector<2x10xf32>
    tpu.vector_store %arg6[%c0_19, %c0_20], %42 {strides = array<i32>} : memref<2x10xf32, #tpu.memory_space<vmem>>, vector<2x10xf32>,
    return
  }
}

</mosaic_0001>

<llo_original>
// kernel: tpu_custom_call.1
$region0: #{tpu_custom_call.1}
  #allocation0 [shape = 'u32[]', space=smem, size = 0x4, offset = 0x4, fixed_abs, tag = 'smem constant byte address 0x4 - core index']
  #allocation1 [shape = 'u32[144,128]{1,0:T(1,128)}', space=vmem, size = 0x12000, scoped, tag = 'internal scratch']
  %s0 = inlined_call_operand.vmem [shape: f32[16,768], index: 0, kind: input, shape index: {}]
  %s1 = inlined_call_operand.vmem [shape: f32[768,32], index: 1, kind: input, shape index: {}]
  %s2 = inlined_call_operand.vmem [shape: f32[1,32], index: 2, kind: input, shape index: {}]
  %s3 = inlined_call_operand.vmem [shape: f32[32,32], index: 3, kind: input, shape index: {}]
  %s4 = inlined_call_operand.vmem [shape: f32[256,10], index: 4, kind: input, shape index: {}]
  %s5 = inlined_call_operand.vmem [shape: f32[1,10], index: 5, kind: input, shape index: {}]
  %s6 = inlined_call_operand.hbm [shape: f32[2,10], index: 6, kind: output, shape index: {}]
  %s7 = sld [smem:[#allocation0]]
  $region34: #{tpu_custom_call.1} parent=0
    _
  %s9 = ssub.s32 1, %s7
  %s10 = scalar_select 0, %s9, %s7
  $region1: #{tpu_custom_call.1} parent=0
    #allocation2 [shape = 'u8[1024]{0}', space=vmem, size = 0x400, scoped, tag = 'output window, operand 0, single buffered']
    #allocation3 [shape = 's32[1]{0}', space=sflag, size = 0x4, scoped, tag = 'scoped memory for tpu_custom_call.1']
    %11 = vsyncpa [#allocation3], 0
    // Predicated region
    $region2: #{tpu_custom_call.1} parent=1 // pred_check
      _
    $region3: #{tpu_custom_call.1} parent=1 // pred_check_branch
      %13 = sbr.rel (0) target = $region5
    $region4: #{tpu_custom_call.1} parent=1 // pred_region
      _
    $region5: #{tpu_custom_call.1} parent=1 // pred_fallthru
      _
    // Predicated region
    $region6: #{tpu_custom_call.1} parent=1 // pred_check
      _
    $region7: #{tpu_custom_call.1} parent=1 // pred_check_branch
      %15 = sbr.rel (0) target = $region9
    $region8: #{tpu_custom_call.1} parent=1 // pred_region
      _
    $region9: #{tpu_custom_call.1} parent=1 // pred_fallthru
      _
    // Predicated region
    $region10: #{tpu_custom_call.1} parent=1 // pred_check
      _
    $region11: #{tpu_custom_call.1} parent=1 // pred_check_branch
      %17 = sbr.rel (0) target = $region13
    $region12: #{tpu_custom_call.1} parent=1 // pred_region
      _
    $region13: #{tpu_custom_call.1} parent=1 // pred_fallthru
      _
    // Predicated region
    $region14: #{tpu_custom_call.1} parent=1 // pred_check
      _
    $region15: #{tpu_custom_call.1} parent=1 // pred_check_branch
      %19 = sbr.rel (0) target = $region17
    $region16: #{tpu_custom_call.1} parent=1 // pred_region
      _
    $region17: #{tpu_custom_call.1} parent=1 // pred_fallthru
      _
    // Predicated region
    $region18: #{tpu_custom_call.1} parent=1 // pred_check
      _
    $region19: #{tpu_custom_call.1} parent=1 // pred_check_branch
      %21 = sbr.rel (0) target = $region21
    $region20: #{tpu_custom_call.1} parent=1 // pred_region
      _
    $region21: #{tpu_custom_call.1} parent=1 // pred_fallthru
      _
    // Predicated region
    $region22: #{tpu_custom_call.1} parent=1 // pred_check
      _
    $region23: #{tpu_custom_call.1} parent=1 // pred_check_branch
      %23 = sbr.rel (0) target = $region25
    $region24: #{tpu_custom_call.1} parent=1 // pred_region
      _
    $region25: #{tpu_custom_call.1} parent=1 // pred_fallthru
      _
    %v24 = vld [vmem:[%s0] sm:$0xff]
    %v25 = vld [vmem:[%s0 + $0x8] sm:$0xff]
    %v26 = vld [vmem:[%s0 + $0x10] sm:$0xff]
    %v27 = vld [vmem:[%s0 + $0x18] sm:$0xff]
    %v28 = vld [vmem:[%s0 + $0x20] sm:$0xff]
    %v29 = vld [vmem:[%s0 + $0x28] sm:$0xff]
    %v30 = vld [vmem:[%s0 + $0x30] sm:$0xff]
    %v31 = vld [vmem:[%s0 + $0x38] sm:$0xff]
    %v32 = vld [vmem:[%s0 + $0x40] sm:$0xff]
    %v33 = vld [vmem:[%s0 + $0x48] sm:$0xff]
    %v34 = vld [vmem:[%s0 + $0x50] sm:$0xff]
    %v35 = vld [vmem:[%s0 + $0x58] sm:$0xff]
    %v36 = vld [vmem:[%s1] sm:$0xff]
    %v37 = vld [vmem:[%s1 + $0x8] sm:$0xff]
    %v38 = vld [vmem:[%s1 + $0x10] sm:$0xff]
    %v39 = vld [vmem:[%s1 + $0x18] sm:$0xff]
    %v40 = vld [vmem:[%s1 + $0x20] sm:$0xff]
    %v41 = vld [vmem:[%s1 + $0x28] sm:$0xff]
    %v42 = vld [vmem:[%s1 + $0x30] sm:$0xff]
    %v43 = vld [vmem:[%s1 + $0x38] sm:$0xff]
    %v44 = vld [vmem:[%s1 + $0x40] sm:$0xff]
    %v45 = vld [vmem:[%s1 + $0x48] sm:$0xff]
    %v46 = vld [vmem:[%s1 + $0x50] sm:$0xff]
    %v47 = vld [vmem:[%s1 + $0x58] sm:$0xff]
    %v48 = vld [vmem:[%s1 + $0x60] sm:$0xff]
    %v49 = vld [vmem:[%s1 + $0x68] sm:$0xff]
    %v50 = vld [vmem:[%s1 + $0x70] sm:$0xff]
    %v51 = vld [vmem:[%s1 + $0x78] sm:$0xff]
    %v52 = vld [vmem:[%s1 + $0x80] sm:$0xff]
    %v53 = vld [vmem:[%s1 + $0x88] sm:$0xff]
    %v54 = vld [vmem:[%s1 + $0x90] sm:$0xff]
    %v55 = vld [vmem:[%s1 + $0x98] sm:$0xff]
    %v56 = vld [vmem:[%s1 + $0xa0] sm:$0xff]
    %v57 = vld [vmem:[%s1 + $0xa8] sm:$0xff]
    %v58 = vld [vmem:[%s1 + $0xb0] sm:$0xff]
    %v59 = vld [vmem:[%s1 + $0xb8] sm:$0xff]
    %v60 = vld [vmem:[%s1 + $0xc0] sm:$0xff]
    %v61 = vld [vmem:[%s1 + $0xc8] sm:$0xff]
    %v62 = vld [vmem:[%s1 + $0xd0] sm:$0xff]
    %v63 = vld [vmem:[%s1 + $0xd8] sm:$0xff]
    %v64 = vld [vmem:[%s1 + $0xe0] sm:$0xff]
    %v65 = vld [vmem:[%s1 + $0xe8] sm:$0xff]
    %v66 = vld [vmem:[%s1 + $0xf0] sm:$0xff]
    %v67 = vld [vmem:[%s1 + $0xf8] sm:$0xff]
    %v68 = vld [vmem:[%s1 + $0x100] sm:$0xff]
    %v69 = vld [vmem:[%s1 + $0x108] sm:$0xff]
    %v70 = vld [vmem:[%s1 + $0x110] sm:$0xff]
    %v71 = vld [vmem:[%s1 + $0x118] sm:$0xff]
    %v72 = vld [vmem:[%s1 + $0x120] sm:$0xff]
    %v73 = vld [vmem:[%s1 + $0x128] sm:$0xff]
    %v74 = vld [vmem:[%s1 + $0x130] sm:$0xff]
    %v75 = vld [vmem:[%s1 + $0x138] sm:$0xff]
    %v76 = vld [vmem:[%s1 + $0x140] sm:$0xff]
    %v77 = vld [vmem:[%s1 + $0x148] sm:$0xff]
    %v78 = vld [vmem:[%s1 + $0x150] sm:$0xff]
    %v79 = vld [vmem:[%s1 + $0x158] sm:$0xff]
    %v80 = vld [vmem:[%s1 + $0x160] sm:$0xff]
    %v81 = vld [vmem:[%s1 + $0x168] sm:$0xff]
    %v82 = vld [vmem:[%s1 + $0x170] sm:$0xff]
    %v83 = vld [vmem:[%s1 + $0x178] sm:$0xff]
    %v84 = vld [vmem:[%s1 + $0x180] sm:$0xff]
    %v85 = vld [vmem:[%s1 + $0x188] sm:$0xff]
    %v86 = vld [vmem:[%s1 + $0x190] sm:$0xff]
    %v87 = vld [vmem:[%s1 + $0x198] sm:$0xff]
    %v88 = vld [vmem:[%s1 + $0x1a0] sm:$0xff]
    %v89 = vld [vmem:[%s1 + $0x1a8] sm:$0xff]
    %v90 = vld [vmem:[%s1 + $0x1b0] sm:$0xff]
    %v91 = vld [vmem:[%s1 + $0x1b8] sm:$0xff]
    %v92 = vld [vmem:[%s1 + $0x1c0] sm:$0xff]
    %v93 = vld [vmem:[%s1 + $0x1c8] sm:$0xff]
    %v94 = vld [vmem:[%s1 + $0x1d0] sm:$0xff]
    %v95 = vld [vmem:[%s1 + $0x1d8] sm:$0xff]
    %v96 = vld [vmem:[%s1 + $0x1e0] sm:$0xff]
    %v97 = vld [vmem:[%s1 + $0x1e8] sm:$0xff]
    %v98 = vld [vmem:[%s1 + $0x1f0] sm:$0xff]
    %v99 = vld [vmem:[%s1 + $0x1f8] sm:$0xff]
    %v100 = vld [vmem:[%s1 + $0x200] sm:$0xff]
    %v101 = vld [vmem:[%s1 + $0x208] sm:$0xff]
    %v102 = vld [vmem:[%s1 + $0x210] sm:$0xff]
    %v103 = vld [vmem:[%s1 + $0x218] sm:$0xff]
    %v104 = vld [vmem:[%s1 + $0x220] sm:$0xff]
    %v105 = vld [vmem:[%s1 + $0x228] sm:$0xff]
    %v106 = vld [vmem:[%s1 + $0x230] sm:$0xff]
    %v107 = vld [vmem:[%s1 + $0x238] sm:$0xff]
    %v108 = vld [vmem:[%s1 + $0x240] sm:$0xff]
    %v109 = vld [vmem:[%s1 + $0x248] sm:$0xff]
    %v110 = vld [vmem:[%s1 + $0x250] sm:$0xff]
    %v111 = vld [vmem:[%s1 + $0x258] sm:$0xff]
    %v112 = vld [vmem:[%s1 + $0x260] sm:$0xff]
    %v113 = vld [vmem:[%s1 + $0x268] sm:$0xff]
    %v114 = vld [vmem:[%s1 + $0x270] sm:$0xff]
    %v115 = vld [vmem:[%s1 + $0x278] sm:$0xff]
    %v116 = vld [vmem:[%s1 + $0x280] sm:$0xff]
    %v117 = vld [vmem:[%s1 + $0x288] sm:$0xff]
    %v118 = vld [vmem:[%s1 + $0x290] sm:$0xff]
    %v119 = vld [vmem:[%s1 + $0x298] sm:$0xff]
    %v120 = vld [vmem:[%s1 + $0x2a0] sm:$0xff]
    %v121 = vld [vmem:[%s1 + $0x2a8] sm:$0xff]
    %v122 = vld [vmem:[%s1 + $0x2b0] sm:$0xff]
    %v123 = vld [vmem:[%s1 + $0x2b8] sm:$0xff]
    %v124 = vld [vmem:[%s1 + $0x2c0] sm:$0xff]
    %v125 = vld [vmem:[%s1 + $0x2c8] sm:$0xff]
    %v126 = vld [vmem:[%s1 + $0x2d0] sm:$0xff]
    %v127 = vld [vmem:[%s1 + $0x2d8] sm:$0xff]
    %v128 = vld [vmem:[%s1 + $0x2e0] sm:$0xff]
    %v129 = vld [vmem:[%s1 + $0x2e8] sm:$0xff]
    %v130 = vld [vmem:[%s1 + $0x2f0] sm:$0xff]
    %v131 = vld [vmem:[%s1 + $0x2f8] sm:$0xff]
    %v132 = vld [vmem:[%s2] sm:$0x1]
    %v134 = vlaneseq
    %v135 = vshrl.u32 %v134, 7
    %v136 = vsub.s32 0, %v135
    %v137 = vrot.slane %v132, %v136
    %139 = vmatprep.subr.mxu0 0.0
    %140 = vmatpush1.msra.mxu0 %v36
    %141 = vmatprep.subr.mxu0 0.0
    %142 = vmatpush1.msra.mxu0 %v37
    %143 = vmatprep.subr.mxu0 0.0
    %144 = vmatpush1.msra.mxu0 %v38
    %145 = vmatprep.subr.mxu0 0.0
    %146 = vmatpush1.msra.mxu0 %v39
    %147 = vmatprep.subr.mxu0 0.0
    %148 = vmatpush1.msra.mxu0 %v40
    %149 = vmatprep.subr.mxu0 0.0
    %150 = vmatpush1.msra.mxu0 %v41
    %151 = vmatprep.subr.mxu0 0.0
    %152 = vmatpush1.msra.mxu0 %v42
    %153 = vmatprep.subr.mxu0 0.0
    %154 = vmatpush1.msra.mxu0 %v43
    %155 = vmatprep.subr.mxu0 0.0
    %156 = vmatpush1.msra.mxu0 %v44
    %157 = vmatprep.subr.mxu0 0.0
    %158 = vmatpush1.msra.mxu0 %v45
    %159 = vmatprep.subr.mxu0 0.0
    %160 = vmatpush1.msra.mxu0 %v46
    %161 = vmatprep.subr.mxu0 0.0
    %162 = vmatpush1.msra.mxu0 %v47
    %163 = vmatprep.subr.mxu0 0.0
    %164 = vmatpush1.msra.mxu0 %v48
    %165 = vmatprep.subr.mxu0 0.0
    %166 = vmatpush1.msra.mxu0 %v49
    %167 = vmatprep.subr.mxu0 0.0
    %168 = vmatpush1.msra.mxu0 %v50
    %169 = vmatprep.subr.mxu0 0.0
    %170 = vmatpush1.msra.mxu0 %v51
    %171 = vmatprep.subr.mxu0 0.0
    %172 = vmatpush1.msra.mxu0 %v52
    %173 = vmatprep.subr.mxu0 0.0
    %174 = vmatpush1.msra.mxu0 %v53
    %175 = vmatprep.subr.mxu0 0.0
    %176 = vmatpush1.msra.mxu0 %v54
    %177 = vmatprep.subr.mxu0 0.0
    %178 = vmatpush1.msra.mxu0 %v55
    %179 = vmatprep.subr.mxu0 0.0
    %180 = vmatpush1.msra.mxu0 %v56
    %181 = vmatprep.subr.mxu0 0.0
    %182 = vmatpush1.msra.mxu0 %v57
    %183 = vmatprep.subr.mxu0 0.0
    %184 = vmatpush1.msra.mxu0 %v58
    %185 = vmatprep.subr.mxu0 0.0
    %186 = vmatpush1.msra.mxu0 %v59
    %187 = vmatprep.subr.mxu0 0.0
    %188 = vmatpush1.msra.mxu0 %v60
    %189 = vmatprep.subr.mxu0 0.0
    %190 = vmatpush1.msra.mxu0 %v61
    %191 = vmatprep.subr.mxu0 0.0
    %192 = vmatpush1.msra.mxu0 %v62
    %193 = vmatprep.subr.mxu0 0.0
    %194 = vmatpush1.msra.mxu0 %v63
    %195 = vmatprep.subr.mxu0 0.0
    %196 = vmatpush1.msra.mxu0 %v64
    %197 = vmatprep.subr.mxu0 0.0
    %198 = vmatpush1.msra.mxu0 %v65
    %199 = vmatprep.subr.mxu0 0.0
    %200 = vmatpush1.msra.mxu0 %v66
    %201 = vmatprep.subr.mxu0 0.0
    %202 = vmatpush1.msra.mxu0 %v67
    %203 = vmatprep.mubr.f32.mxu0 %v25
    %204 = vmatmul.mubr.f32.gmra.mrb[0].mxu0 %v24
    %v205 = vpop.f32.mrb[0].mxu0
    %v206 = vadd.f32 %v137, %v205
    %v207 = vpop.f32.mrb[0].mxu0
    %208 = vmatprep.mubr.f32.mxu0 %v31
    %209 = vmatmul.mubr.f32.gmra.mrb[0].mxu0 %v30
    %v210 = vpop.f32.mrb[0].mxu0
    %v211 = vadd.f32 %v137, %v210
    %v212 = vpop.f32.mrb[0].mxu0
    %213 = vdwg.mxu0
    %214 = vmatprep.subr.mxu0 0.0
    %215 = vmatpush1.msra.mxu0 %v68
    %216 = vmatprep.subr.mxu0 0.0
    %217 = vmatpush1.msra.mxu0 %v69
    %218 = vmatprep.subr.mxu0 0.0
    %219 = vmatpush1.msra.mxu0 %v70
    %220 = vmatprep.subr.mxu0 0.0
    %221 = vmatpush1.msra.mxu0 %v71
    %222 = vmatprep.subr.mxu0 0.0
    %223 = vmatpush1.msra.mxu0 %v72
    %224 = vmatprep.subr.mxu0 0.0
    %225 = vmatpush1.msra.mxu0 %v73
    %226 = vmatprep.subr.mxu0 0.0
    %227 = vmatpush1.msra.mxu0 %v74
    %228 = vmatprep.subr.mxu0 0.0
    %229 = vmatpush1.msra.mxu0 %v75
    %230 = vmatprep.subr.mxu0 0.0
    %231 = vmatpush1.msra.mxu0 %v76
    %232 = vmatprep.subr.mxu0 0.0
    %233 = vmatpush1.msra.mxu0 %v77
    %234 = vmatprep.subr.mxu0 0.0
    %235 = vmatpush1.msra.mxu0 %v78
    %236 = vmatprep.subr.mxu0 0.0
    %237 = vmatpush1.msra.mxu0 %v79
    %238 = vmatprep.subr.mxu0 0.0
    %239 = vmatpush1.msra.mxu0 %v80
    %240 = vmatprep.subr.mxu0 0.0
    %241 = vmatpush1.msra.mxu0 %v81
    %242 = vmatprep.subr.mxu0 0.0
    %243 = vmatpush1.msra.mxu0 %v82
    %244 = vmatprep.subr.mxu0 0.0
    %245 = vmatpush1.msra.mxu0 %v83
    %246 = vmatprep.subr.mxu0 0.0
    %247 = vmatpush1.msra.mxu0 %v84
    %248 = vmatprep.subr.mxu0 0.0
    %249 = vmatpush1.msra.mxu0 %v85
    %250 = vmatprep.subr.mxu0 0.0
    %251 = vmatpush1.msra.mxu0 %v86
    %252 = vmatprep.subr.mxu0 0.0
    %253 = vmatpush1.msra.mxu0 %v87
    %254 = vmatprep.subr.mxu0 0.0
    %255 = vmatpush1.msra.mxu0 %v88
    %256 = vmatprep.subr.mxu0 0.0
    %257 = vmatpush1.msra.mxu0 %v89
    %258 = vmatprep.subr.mxu0 0.0
    %259 = vmatpush1.msra.mxu0 %v90
    %260 = vmatprep.subr.mxu0 0.0
    %261 = vmatpush1.msra.mxu0 %v91
    %262 = vmatprep.subr.mxu0 0.0
    %263 = vmatpush1.msra.mxu0 %v92
    %264 = vmatprep.subr.mxu0 0.0
    %265 = vmatpush1.msra.mxu0 %v93
    %266 = vmatprep.subr.mxu0 0.0
    %267 = vmatpush1.msra.mxu0 %v94
    %268 = vmatprep.subr.mxu0 0.0
    %269 = vmatpush1.msra.mxu0 %v95
    %270 = vmatprep.subr.mxu0 0.0
    %271 = vmatpush1.msra.mxu0 %v96
    %272 = vmatprep.subr.mxu0 0.0
    %273 = vmatpush1.msra.mxu0 %v97
    %274 = vmatprep.subr.mxu0 0.0
    %275 = vmatpush1.msra.mxu0 %v98
    %276 = vmatprep.subr.mxu0 0.0
    %277 = vmatpush1.msra.mxu0 %v99
    %278 = vmatprep.mubr.f32.mxu0 %v27
    %279 = vmatmul.mubr.f32.gmra.mrb[0].mxu0 %v26
    %v280 = vpop.f32.mrb[0].mxu0
    %v281 = vadd.f32 %v206, %v280
    %v282 = vpop.f32.mrb[0].mxu0
    %283 = vmatprep.mubr.f32.mxu0 %v33
    %284 = vmatmul.mubr.f32.gmra.mrb[0].mxu0 %v32
    %v285 = vpop.f32.mrb[0].mxu0
    %v286 = vadd.f32 %v211, %v285
    %v287 = vpop.f32.mrb[0].mxu0
    %288 = vdwg.mxu0
    %289 = vmatprep.subr.mxu0 0.0
    %290 = vmatpush1.msra.mxu0 %v100
    %291 = vmatprep.subr.mxu0 0.0
    %292 = vmatpush1.msra.mxu0 %v101
    %293 = vmatprep.subr.mxu0 0.0
    %294 = vmatpush1.msra.mxu0 %v102
    %295 = vmatprep.subr.mxu0 0.0
    %296 = vmatpush1.msra.mxu0 %v103
    %297 = vmatprep.subr.mxu0 0.0
    %298 = vmatpush1.msra.mxu0 %v104
    %299 = vmatprep.subr.mxu0 0.0
    %300 = vmatpush1.msra.mxu0 %v105
    %301 = vmatprep.subr.mxu0 0.0
    %302 = vmatpush1.msra.mxu0 %v106
    %303 = vmatprep.subr.mxu0 0.0
    %304 = vmatpush1.msra.mxu0 %v107
    %305 = vmatprep.subr.mxu0 0.0
    %306 = vmatpush1.msra.mxu0 %v108
    %307 = vmatprep.subr.mxu0 0.0
    %308 = vmatpush1.msra.mxu0 %v109
    %309 = vmatprep.subr.mxu0 0.0
    %310 = vmatpush1.msra.mxu0 %v110
    %311 = vmatprep.subr.mxu0 0.0
    %312 = vmatpush1.msra.mxu0 %v111
    %313 = vmatprep.subr.mxu0 0.0
    %314 = vmatpush1.msra.mxu0 %v112
    %315 = vmatprep.subr.mxu0 0.0
    %316 = vmatpush1.msra.mxu0 %v113
    %317 = vmatprep.subr.mxu0 0.0
    %318 = vmatpush1.msra.mxu0 %v114
    %319 = vmatprep.subr.mxu0 0.0
    %320 = vmatpush1.msra.mxu0 %v115
    %321 = vmatprep.subr.mxu0 0.0
    %322 = vmatpush1.msra.mxu0 %v116
    %323 = vmatprep.subr.mxu0 0.0
    %324 = vmatpush1.msra.mxu0 %v117
    %325 = vmatprep.subr.mxu0 0.0
    %326 = vmatpush1.msra.mxu0 %v118
    %327 = vmatprep.subr.mxu0 0.0
    %328 = vmatpush1.msra.mxu0 %v119
    %329 = vmatprep.subr.mxu0 0.0
    %330 = vmatpush1.msra.mxu0 %v120
    %331 = vmatprep.subr.mxu0 0.0
    %332 = vmatpush1.msra.mxu0 %v121
    %333 = vmatprep.subr.mxu0 0.0
    %334 = vmatpush1.msra.mxu0 %v122
    %335 = vmatprep.subr.mxu0 0.0
    %336 = vmatpush1.msra.mxu0 %v123
    %337 = vmatprep.subr.mxu0 0.0
    %338 = vmatpush1.msra.mxu0 %v124
    %339 = vmatprep.subr.mxu0 0.0
    %340 = vmatpush1.msra.mxu0 %v125
    %341 = vmatprep.subr.mxu0 0.0
    %342 = vmatpush1.msra.mxu0 %v126
    %343 = vmatprep.subr.mxu0 0.0
    %344 = vmatpush1.msra.mxu0 %v127
    %345 = vmatprep.subr.mxu0 0.0
    %346 = vmatpush1.msra.mxu0 %v128
    %347 = vmatprep.subr.mxu0 0.0
    %348 = vmatpush1.msra.mxu0 %v129
    %349 = vmatprep.subr.mxu0 0.0
    %350 = vmatpush1.msra.mxu0 %v130
    %351 = vmatprep.subr.mxu0 0.0
    %352 = vmatpush1.msra.mxu0 %v131
    %353 = vmatprep.mubr.f32.mxu0 %v29
    %354 = vmatmul.mubr.f32.gmra.mrb[0].mxu0 %v28
    %v355 = vpop.f32.mrb[0].mxu0
    %v356 = vadd.f32 %v281, %v355
    %v357 = vpop.f32.mrb[0].mxu0
    %358 = vmatprep.mubr.f32.mxu0 %v35
    %359 = vmatmul.mubr.f32.gmra.mrb[0].mxu0 %v34
    %v360 = vpop.f32.mrb[0].mxu0
    %v361 = vadd.f32 %v286, %v360
    %v362 = vpop.f32.mrb[0].mxu0
    %363 = vdwg.mxu0
    %v364 = vld [vmem:[%s3] sm:$0xff]
    %v365 = vld [vmem:[%s3 + $0x8] sm:$0xff]
    %v366 = vld [vmem:[%s3 + $0x10] sm:$0xff]
    %v367 = vld [vmem:[%s3 + $0x18] sm:$0xff]
    %v368 = vtanh.pop %v356
    %vm369 = vcmask 261120
    %v371 = vsel %vm369, %v368, 0
    %373 = vmatprep.subr.mxu0 0.0
    %374 = vmatpush1.msra.mxu0 %v364
    %375 = vmatprep.subr.mxu0 0.0
    %376 = vmatpush1.msra.mxu0 %v365
    %377 = vmatprep.subr.mxu0 0.0
    %378 = vmatpush1.msra.mxu0 %v366
    %379 = vmatprep.subr.mxu0 0.0
    %380 = vmatpush1.msra.mxu0 %v367
    %381 = vmatprep.subr.mxu0 0.0
    %382 = vmatpush1.msra.mxu0 0.0
    %383 = vmatprep.subr.mxu0 0.0
    %384 = vmatpush1.msra.mxu0 0.0
    %385 = vmatprep.subr.mxu0 0.0
    %386 = vmatpush1.msra.mxu0 0.0
    %387 = vmatprep.subr.mxu0 0.0
    %388 = vmatpush1.msra.mxu0 0.0
    %389 = vmatprep.subr.mxu0 0.0
    %390 = vmatpush1.msra.mxu0 0.0
    %391 = vmatprep.subr.mxu0 0.0
    %392 = vmatpush1.msra.mxu0 0.0
    %393 = vmatprep.subr.mxu0 0.0
    %394 = vmatpush1.msra.mxu0 0.0
    %395 = vmatprep.subr.mxu0 0.0
    %396 = vmatpush1.msra.mxu0 0.0
    %397 = vmatprep.subr.mxu0 0.0
    %398 = vmatpush1.msra.mxu0 0.0
    %399 = vmatprep.subr.mxu0 0.0
    %400 = vmatpush1.msra.mxu0 0.0
    %401 = vmatprep.subr.mxu0 0.0
    %402 = vmatpush1.msra.mxu0 0.0
    %403 = vmatprep.subr.mxu0 0.0
    %404 = vmatpush1.msra.mxu0 0.0
    %405 = vmatprep.subr.mxu0 0.0
    %406 = vmatpush1.msra.mxu0 0.0
    %407 = vmatprep.subr.mxu0 0.0
    %408 = vmatpush1.msra.mxu0 0.0
    %409 = vmatprep.subr.mxu0 0.0
    %410 = vmatpush1.msra.mxu0 0.0
    %411 = vmatprep.subr.mxu0 0.0
    %412 = vmatpush1.msra.mxu0 0.0
    %413 = vmatprep.subr.mxu0 0.0
    %414 = vmatpush1.msra.mxu0 0.0
    %415 = vmatprep.subr.mxu0 0.0
    %416 = vmatpush1.msra.mxu0 0.0
    %417 = vmatprep.subr.mxu0 0.0
    %418 = vmatpush1.msra.mxu0 0.0
    %419 = vmatprep.subr.mxu0 0.0
    %420 = vmatpush1.msra.mxu0 0.0
    %421 = vmatprep.subr.mxu0 0.0
    %422 = vmatpush1.msra.mxu0 0.0
    %423 = vmatprep.subr.mxu0 0.0
    %424 = vmatpush1.msra.mxu0 0.0
    %425 = vmatprep.subr.mxu0 0.0
    %426 = vmatpush1.msra.mxu0 0.0
    %427 = vmatprep.subr.mxu0 0.0
    %428 = vmatpush1.msra.mxu0 0.0
    %429 = vmatprep.subr.mxu0 0.0
    %430 = vmatpush1.msra.mxu0 0.0
    %431 = vmatprep.subr.mxu0 0.0
    %432 = vmatpush1.msra.mxu0 0.0
    %433 = vmatprep.subr.mxu0 0.0
    %434 = vmatpush1.msra.mxu0 0.0
    %435 = vmatprep.subr.mxu0 0.0
    %436 = vmatpush1.msra.mxu0 0.0
    %437 = vmatprep.mubr.f32.mxu0 0.0
    %438 = vmatmul.mubr.f32.gmra.mrb[0].mxu0 %v371
    %v439 = vpop.f32.mrb[0].mxu0
    %v440 = vadd.f32 0.0, %v439
    %v441 = vpop.f32.mrb[0].mxu0
    %442 = vdwg.mxu0
    %v444 = vrot.slane %v440, 6
    %v446 = vadd.f32 %v356, %v444
    %v447 = vtanh.pop %v446
    %v449 = vrot.slane %v447, 2
    %v450 = vsel %vm369, %v449, 0
    %452 = vmatprep.subr.mxu0 0.0
    %453 = vmatpush1.msra.mxu0 %v364
    %454 = vmatprep.subr.mxu0 0.0
    %455 = vmatpush1.msra.mxu0 %v365
    %456 = vmatprep.subr.mxu0 0.0
    %457 = vmatpush1.msra.mxu0 %v366
    %458 = vmatprep.subr.mxu0 0.0
    %459 = vmatpush1.msra.mxu0 %v367
    %460 = vmatprep.subr.mxu0 0.0
    %461 = vmatpush1.msra.mxu0 0.0
    %462 = vmatprep.subr.mxu0 0.0
    %463 = vmatpush1.msra.mxu0 0.0
    %464 = vmatprep.subr.mxu0 0.0
    %465 = vmatpush1.msra.mxu0 0.0
    %466 = vmatprep.subr.mxu0 0.0
    %467 = vmatpush1.msra.mxu0 0.0
    %468 = vmatprep.subr.mxu0 0.0
    %469 = vmatpush1.msra.mxu0 0.0
    %470 = vmatprep.subr.mxu0 0.0
    %471 = vmatpush1.msra.mxu0 0.0
    %472 = vmatprep.subr.mxu0 0.0
    %473 = vmatpush1.msra.mxu0 0.0
    %474 = vmatprep.subr.mxu0 0.0
    %475 = vmatpush1.msra.mxu0 0.0
    %476 = vmatprep.subr.mxu0 0.0
    %477 = vmatpush1.msra.mxu0 0.0
    %478 = vmatprep.subr.mxu0 0.0
    %479 = vmatpush1.msra.mxu0 0.0
    %480 = vmatprep.subr.mxu0 0.0
    %481 = vmatpush1.msra.mxu0 0.0
    %482 = vmatprep.subr.mxu0 0.0
    %483 = vmatpush1.msra.mxu0 0.0
    %484 = vmatprep.subr.mxu0 0.0
    %485 = vmatpush1.msra.mxu0 0.0
    %486 = vmatprep.subr.mxu0 0.0
    %487 = vmatpush1.msra.mxu0 0.0
    %488 = vmatprep.subr.mxu0 0.0
    %489 = vmatpush1.msra.mxu0 0.0
    %490 = vmatprep.subr.mxu0 0.0
    %491 = vmatpush1.msra.mxu0 0.0
    %492 = vmatprep.subr.mxu0 0.0
    %493 = vmatpush1.msra.mxu0 0.0
    %494 = vmatprep.subr.mxu0 0.0
    %495 = vmatpush1.msra.mxu0 0.0
    %496 = vmatprep.subr.mxu0 0.0
    %497 = vmatpush1.msra.mxu0 0.0
    %498 = vmatprep.subr.mxu0 0.0
    %499 = vmatpush1.msra.mxu0 0.0
    %500 = vmatprep.subr.mxu0 0.0
    %501 = vmatpush1.msra.mxu0 0.0
    %502 = vmatprep.subr.mxu0 0.0
    %503 = vmatpush1.msra.mxu0 0.0
    %504 = vmatprep.subr.mxu0 0.0
    %505 = vmatpush1.msra.mxu0 0.0
    %506 = vmatprep.subr.mxu0 0.0
    %507 = vmatpush1.msra.mxu0 0.0
    %508 = vmatprep.subr.mxu0 0.0
    %509 = vmatpush1.msra.mxu0 0.0
    %510 = vmatprep.subr.mxu0 0.0
    %511 = vmatpush1.msra.mxu0 0.0
    %512 = vmatprep.subr.mxu0 0.0
    %513 = vmatpush1.msra.mxu0 0.0
    %514 = vmatprep.subr.mxu0 0.0
    %515 = vmatpush1.msra.mxu0 0.0
    %516 = vmatprep.mubr.f32.mxu0 0.0
    %517 = vmatmul.mubr.f32.gmra.mrb[0].mxu0 %v450
    %v518 = vpop.f32.mrb[0].mxu0
    %v519 = vadd.f32 0.0, %v518
    %v520 = vpop.f32.mrb[0].mxu0
    %521 = vdwg.mxu0
    %v523 = vrot.slane %v519, 4
    %v525 = vadd.f32 %v356, %v523
    %v526 = vtanh.pop %v525
    %v528 = vrot.slane %v526, 4
    %v529 = vsel %vm369, %v528, 0
    %531 = vmatprep.subr.mxu0 0.0
    %532 = vmatpush1.msra.mxu0 %v364
    %533 = vmatprep.subr.mxu0 0.0
    %534 = vmatpush1.msra.mxu0 %v365
    %535 = vmatprep.subr.mxu0 0.0
    %536 = vmatpush1.msra.mxu0 %v366
    %537 = vmatprep.subr.mxu0 0.0
    %538 = vmatpush1.msra.mxu0 %v367
    %539 = vmatprep.subr.mxu0 0.0
    %540 = vmatpush1.msra.mxu0 0.0
    %541 = vmatprep.subr.mxu0 0.0
    %542 = vmatpush1.msra.mxu0 0.0
    %543 = vmatprep.subr.mxu0 0.0
    %544 = vmatpush1.msra.mxu0 0.0
    %545 = vmatprep.subr.mxu0 0.0
    %546 = vmatpush1.msra.mxu0 0.0
    %547 = vmatprep.subr.mxu0 0.0
    %548 = vmatpush1.msra.mxu0 0.0
    %549 = vmatprep.subr.mxu0 0.0
    %550 = vmatpush1.msra.mxu0 0.0
    %551 = vmatprep.subr.mxu0 0.0
    %552 = vmatpush1.msra.mxu0 0.0
    %553 = vmatprep.subr.mxu0 0.0
    %554 = vmatpush1.msra.mxu0 0.0
    %555 = vmatprep.subr.mxu0 0.0
    %556 = vmatpush1.msra.mxu0 0.0
    %557 = vmatprep.subr.mxu0 0.0
    %558 = vmatpush1.msra.mxu0 0.0
    %559 = vmatprep.subr.mxu0 0.0
    %560 = vmatpush1.msra.mxu0 0.0
    %561 = vmatprep.subr.mxu0 0.0
    %562 = vmatpush1.msra.mxu0 0.0
    %563 = vmatprep.subr.mxu0 0.0
    %564 = vmatpush1.msra.mxu0 0.0
    %565 = vmatprep.subr.mxu0 0.0
    %566 = vmatpush1.msra.mxu0 0.0
    %567 = vmatprep.subr.mxu0 0.0
    %568 = vmatpush1.msra.mxu0 0.0
    %569 = vmatprep.subr.mxu0 0.0
    %570 = vmatpush1.msra.mxu0 0.0
    %571 = vmatprep.subr.mxu0 0.0
    %572 = vmatpush1.msra.mxu0 0.0
    %573 = vmatprep.subr.mxu0 0.0
    %574 = vmatpush1.msra.mxu0 0.0
    %575 = vmatprep.subr.mxu0 0.0
    %576 = vmatpush1.msra.mxu0 0.0
    %577 = vmatprep.subr.mxu0 0.0
    %578 = vmatpush1.msra.mxu0 0.0
    %579 = vmatprep.subr.mxu0 0.0
    %580 = vmatpush1.msra.mxu0 0.0
    %581 = vmatprep.subr.mxu0 0.0
    %582 = vmatpush1.msra.mxu0 0.0
    %583 = vmatprep.subr.mxu0 0.0
    %584 = vmatpush1.msra.mxu0 0.0
    %585 = vmatprep.subr.mxu0 0.0
    %586 = vmatpush1.msra.mxu0 0.0
    %587 = vmatprep.subr.mxu0 0.0
    %588 = vmatpush1.msra.mxu0 0.0
    %589 = vmatprep.subr.mxu0 0.0
    %590 = vmatpush1.msra.mxu0 0.0
    %591 = vmatprep.subr.mxu0 0.0
    %592 = vmatpush1.msra.mxu0 0.0
    %593 = vmatprep.subr.mxu0 0.0
    %594 = vmatpush1.msra.mxu0 0.0
    %595 = vmatprep.mubr.f32.mxu0 0.0
    %596 = vmatmul.mubr.f32.gmra.mrb[0].mxu0 %v529
    %v597 = vpop.f32.mrb[0].mxu0
    %v598 = vadd.f32 0.0, %v597
    %v599 = vpop.f32.mrb[0].mxu0
    %600 = vdwg.mxu0
    %v602 = vrot.slane %v598, 2
    %v604 = vadd.f32 %v356, %v602
    %v605 = vtanh.pop %v604
    %v607 = vrot.slane %v605, 6
    %v608 = vsel %vm369, %v607, 0
    %610 = vmatprep.subr.mxu0 0.0
    %611 = vmatpush1.msra.mxu0 %v364
    %612 = vmatprep.subr.mxu0 0.0
    %613 = vmatpush1.msra.mxu0 %v365
    %614 = vmatprep.subr.mxu0 0.0
    %615 = vmatpush1.msra.mxu0 %v366
    %616 = vmatprep.subr.mxu0 0.0
    %617 = vmatpush1.msra.mxu0 %v367
    %618 = vmatprep.subr.mxu0 0.0
    %619 = vmatpush1.msra.mxu0 0.0
    %620 = vmatprep.subr.mxu0 0.0
    %621 = vmatpush1.msra.mxu0 0.0
    %622 = vmatprep.subr.mxu0 0.0
    %623 = vmatpush1.msra.mxu0 0.0
    %624 = vmatprep.subr.mxu0 0.0
    %625 = vmatpush1.msra.mxu0 0.0
    %626 = vmatprep.subr.mxu0 0.0
    %627 = vmatpush1.msra.mxu0 0.0
    %628 = vmatprep.subr.mxu0 0.0
    %629 = vmatpush1.msra.mxu0 0.0
    %630 = vmatprep.subr.mxu0 0.0
    %631 = vmatpush1.msra.mxu0 0.0
    %632 = vmatprep.subr.mxu0 0.0
    %633 = vmatpush1.msra.mxu0 0.0
    %634 = vmatprep.subr.mxu0 0.0
    %635 = vmatpush1.msra.mxu0 0.0
    %636 = vmatprep.subr.mxu0 0.0
    %637 = vmatpush1.msra.mxu0 0.0
    %638 = vmatprep.subr.mxu0 0.0
    %639 = vmatpush1.msra.mxu0 0.0
    %640 = vmatprep.subr.mxu0 0.0
    %641 = vmatpush1.msra.mxu0 0.0
    %642 = vmatprep.subr.mxu0 0.0
    %643 = vmatpush1.msra.mxu0 0.0
    %644 = vmatprep.subr.mxu0 0.0
    %645 = vmatpush1.msra.mxu0 0.0
    %646 = vmatprep.subr.mxu0 0.0
    %647 = vmatpush1.msra.mxu0 0.0
    %648 = vmatprep.subr.mxu0 0.0
    %649 = vmatpush1.msra.mxu0 0.0
    %650 = vmatprep.subr.mxu0 0.0
    %651 = vmatpush1.msra.mxu0 0.0
    %652 = vmatprep.subr.mxu0 0.0
    %653 = vmatpush1.msra.mxu0 0.0
    %654 = vmatprep.subr.mxu0 0.0
    %655 = vmatpush1.msra.mxu0 0.0
    %656 = vmatprep.subr.mxu0 0.0
    %657 = vmatpush1.msra.mxu0 0.0
    %658 = vmatprep.subr.mxu0 0.0
    %659 = vmatpush1.msra.mxu0 0.0
    %660 = vmatprep.subr.mxu0 0.0
    %661 = vmatpush1.msra.mxu0 0.0
    %662 = vmatprep.subr.mxu0 0.0
    %663 = vmatpush1.msra.mxu0 0.0
    %664 = vmatprep.subr.mxu0 0.0
    %665 = vmatpush1.msra.mxu0 0.0
    %666 = vmatprep.subr.mxu0 0.0
    %667 = vmatpush1.msra.mxu0 0.0
    %668 = vmatprep.subr.mxu0 0.0
    %669 = vmatpush1.msra.mxu0 0.0
    %670 = vmatprep.subr.mxu0 0.0
    %671 = vmatpush1.msra.mxu0 0.0
    %672 = vmatprep.subr.mxu0 0.0
    %673 = vmatpush1.msra.mxu0 0.0
    %674 = vmatprep.mubr.f32.mxu0 0.0
    %675 = vmatmul.mubr.f32.gmra.mrb[0].mxu0 %v608
    %v676 = vpop.f32.mrb[0].mxu0
    %v677 = vadd.f32 0.0, %v676
    %v678 = vpop.f32.mrb[0].mxu0
    %679 = vdwg.mxu0
    %v680 = vadd.f32 %v361, %v677
    %v681 = vtanh.pop %v680
    %v683 = vsel %vm369, %v681, 0
    %685 = vmatprep.subr.mxu0 0.0
    %686 = vmatpush1.msra.mxu0 %v364
    %687 = vmatprep.subr.mxu0 0.0
    %688 = vmatpush1.msra.mxu0 %v365
    %689 = vmatprep.subr.mxu0 0.0
    %690 = vmatpush1.msra.mxu0 %v366
    %691 = vmatprep.subr.mxu0 0.0
    %692 = vmatpush1.msra.mxu0 %v367
    %693 = vmatprep.subr.mxu0 0.0
    %694 = vmatpush1.msra.mxu0 0.0
    %695 = vmatprep.subr.mxu0 0.0
    %696 = vmatpush1.msra.mxu0 0.0
    %697 = vmatprep.subr.mxu0 0.0
    %698 = vmatpush1.msra.mxu0 0.0
    %699 = vmatprep.subr.mxu0 0.0
    %700 = vmatpush1.msra.mxu0 0.0
    %701 = vmatprep.subr.mxu0 0.0
    %702 = vmatpush1.msra.mxu0 0.0
    %703 = vmatprep.subr.mxu0 0.0
    %704 = vmatpush1.msra.mxu0 0.0
    %705 = vmatprep.subr.mxu0 0.0
    %706 = vmatpush1.msra.mxu0 0.0
    %707 = vmatprep.subr.mxu0 0.0
    %708 = vmatpush1.msra.mxu0 0.0
    %709 = vmatprep.subr.mxu0 0.0
    %710 = vmatpush1.msra.mxu0 0.0
    %711 = vmatprep.subr.mxu0 0.0
    %712 = vmatpush1.msra.mxu0 0.0
    %713 = vmatprep.subr.mxu0 0.0
    %714 = vmatpush1.msra.mxu0 0.0
    %715 = vmatprep.subr.mxu0 0.0
    %716 = vmatpush1.msra.mxu0 0.0
    %717 = vmatprep.subr.mxu0 0.0
    %718 = vmatpush1.msra.mxu0 0.0
    %719 = vmatprep.subr.mxu0 0.0
    %720 = vmatpush1.msra.mxu0 0.0
    %721 = vmatprep.subr.mxu0 0.0
    %722 = vmatpush1.msra.mxu0 0.0
    %723 = vmatprep.subr.mxu0 0.0
    %724 = vmatpush1.msra.mxu0 0.0
    %725 = vmatprep.subr.mxu0 0.0
    %726 = vmatpush1.msra.mxu0 0.0
    %727 = vmatprep.subr.mxu0 0.0
    %728 = vmatpush1.msra.mxu0 0.0
    %729 = vmatprep.subr.mxu0 0.0
    %730 = vmatpush1.msra.mxu0 0.0
    %731 = vmatprep.subr.mxu0 0.0
    %732 = vmatpush1.msra.mxu0 0.0
    %733 = vmatprep.subr.mxu0 0.0
    %734 = vmatpush1.msra.mxu0 0.0
    %735 = vmatprep.subr.mxu0 0.0
    %736 = vmatpush1.msra.mxu0 0.0
    %737 = vmatprep.subr.mxu0 0.0
    %738 = vmatpush1.msra.mxu0 0.0
    %739 = vmatprep.subr.mxu0 0.0
    %740 = vmatpush1.msra.mxu0 0.0
    %741 = vmatprep.subr.mxu0 0.0
    %742 = vmatpush1.msra.mxu0 0.0
    %743 = vmatprep.subr.mxu0 0.0
    %744 = vmatpush1.msra.mxu0 0.0
    %745 = vmatprep.subr.mxu0 0.0
    %746 = vmatpush1.msra.mxu0 0.0
    %747 = vmatprep.subr.mxu0 0.0
    %748 = vmatpush1.msra.mxu0 0.0
    %749 = vmatprep.mubr.f32.mxu0 0.0
    %750 = vmatmul.mubr.f32.gmra.mrb[0].mxu0 %v683
    %v751 = vpop.f32.mrb[0].mxu0
    %v752 = vadd.f32 0.0, %v751
    %v753 = vpop.f32.mrb[0].mxu0
    %754 = vdwg.mxu0
    %v756 = vrot.slane %v752, 6
    %v758 = vadd.f32 %v361, %v756
    %v759 = vtanh.pop %v758
    %v761 = vrot.slane %v759, 2
    %v762 = vsel %vm369, %v761, 0
    %764 = vmatprep.subr.mxu0 0.0
    %765 = vmatpush1.msra.mxu0 %v364
    %766 = vmatprep.subr.mxu0 0.0
    %767 = vmatpush1.msra.mxu0 %v365
    %768 = vmatprep.subr.mxu0 0.0
    %769 = vmatpush1.msra.mxu0 %v366
    %770 = vmatprep.subr.mxu0 0.0
    %771 = vmatpush1.msra.mxu0 %v367
    %772 = vmatprep.subr.mxu0 0.0
    %773 = vmatpush1.msra.mxu0 0.0
    %774 = vmatprep.subr.mxu0 0.0
    %775 = vmatpush1.msra.mxu0 0.0
    %776 = vmatprep.subr.mxu0 0.0
    %777 = vmatpush1.msra.mxu0 0.0
    %778 = vmatprep.subr.mxu0 0.0
    %779 = vmatpush1.msra.mxu0 0.0
    %780 = vmatprep.subr.mxu0 0.0
    %781 = vmatpush1.msra.mxu0 0.0
    %782 = vmatprep.subr.mxu0 0.0
    %783 = vmatpush1.msra.mxu0 0.0
    %784 = vmatprep.subr.mxu0 0.0
    %785 = vmatpush1.msra.mxu0 0.0
    %786 = vmatprep.subr.mxu0 0.0
    %787 = vmatpush1.msra.mxu0 0.0
    %788 = vmatprep.subr.mxu0 0.0
    %789 = vmatpush1.msra.mxu0 0.0
    %790 = vmatprep.subr.mxu0 0.0
    %791 = vmatpush1.msra.mxu0 0.0
    %792 = vmatprep.subr.mxu0 0.0
    %793 = vmatpush1.msra.mxu0 0.0
    %794 = vmatprep.subr.mxu0 0.0
    %795 = vmatpush1.msra.mxu0 0.0
    %796 = vmatprep.subr.mxu0 0.0
    %797 = vmatpush1.msra.mxu0 0.0
    %798 = vmatprep.subr.mxu0 0.0
    %799 = vmatpush1.msra.mxu0 0.0
    %800 = vmatprep.subr.mxu0 0.0
    %801 = vmatpush1.msra.mxu0 0.0
    %802 = vmatprep.subr.mxu0 0.0
    %803 = vmatpush1.msra.mxu0 0.0
    %804 = vmatprep.subr.mxu0 0.0
    %805 = vmatpush1.msra.mxu0 0.0
    %806 = vmatprep.subr.mxu0 0.0
    %807 = vmatpush1.msra.mxu0 0.0
    %808 = vmatprep.subr.mxu0 0.0
    %809 = vmatpush1.msra.mxu0 0.0
    %810 = vmatprep.subr.mxu0 0.0
    %811 = vmatpush1.msra.mxu0 0.0
    %812 = vmatprep.subr.mxu0 0.0
    %813 = vmatpush1.msra.mxu0 0.0
    %814 = vmatprep.subr.mxu0 0.0
    %815 = vmatpush1.msra.mxu0 0.0
    %816 = vmatprep.subr.mxu0 0.0
    %817 = vmatpush1.msra.mxu0 0.0
    %818 = vmatprep.subr.mxu0 0.0
    %819 = vmatpush1.msra.mxu0 0.0
    %820 = vmatprep.subr.mxu0 0.0
    %821 = vmatpush1.msra.mxu0 0.0
    %822 = vmatprep.subr.mxu0 0.0
    %823 = vmatpush1.msra.mxu0 0.0
    %824 = vmatprep.subr.mxu0 0.0
    %825 = vmatpush1.msra.mxu0 0.0
    %826 = vmatprep.subr.mxu0 0.0
    %827 = vmatpush1.msra.mxu0 0.0
    %828 = vmatprep.mubr.f32.mxu0 0.0
    %829 = vmatmul.mubr.f32.gmra.mrb[0].mxu0 %v762
    %v830 = vpop.f32.mrb[0].mxu0
    %v831 = vadd.f32 0.0, %v830
    %v832 = vpop.f32.mrb[0].mxu0
    %833 = vdwg.mxu0
    %v835 = vrot.slane %v831, 4
    %v837 = vadd.f32 %v361, %v835
    %v838 = vtanh.pop %v837
    %v840 = vrot.slane %v838, 4
    %v841 = vsel %vm369, %v840, 0
    %843 = vmatprep.subr.mxu0 0.0
    %844 = vmatpush1.msra.mxu0 %v364
    %845 = vmatprep.subr.mxu0 0.0
    %846 = vmatpush1.msra.mxu0 %v365
    %847 = vmatprep.subr.mxu0 0.0
    %848 = vmatpush1.msra.mxu0 %v366
    %849 = vmatprep.subr.mxu0 0.0
    %850 = vmatpush1.msra.mxu0 %v367
    %851 = vmatprep.subr.mxu0 0.0
    %852 = vmatpush1.msra.mxu0 0.0
    %853 = vmatprep.subr.mxu0 0.0
    %854 = vmatpush1.msra.mxu0 0.0
    %855 = vmatprep.subr.mxu0 0.0
    %856 = vmatpush1.msra.mxu0 0.0
    %857 = vmatprep.subr.mxu0 0.0
    %858 = vmatpush1.msra.mxu0 0.0
    %859 = vmatprep.subr.mxu0 0.0
    %860 = vmatpush1.msra.mxu0 0.0
    %861 = vmatprep.subr.mxu0 0.0
    %862 = vmatpush1.msra.mxu0 0.0
    %863 = vmatprep.subr.mxu0 0.0
    %864 = vmatpush1.msra.mxu0 0.0
    %865 = vmatprep.subr.mxu0 0.0
    %866 = vmatpush1.msra.mxu0 0.0
    %867 = vmatprep.subr.mxu0 0.0
    %868 = vmatpush1.msra.mxu0 0.0
    %869 = vmatprep.subr.mxu0 0.0
    %870 = vmatpush1.msra.mxu0 0.0
    %871 = vmatprep.subr.mxu0 0.0
    %872 = vmatpush1.msra.mxu0 0.0
    %873 = vmatprep.subr.mxu0 0.0
    %874 = vmatpush1.msra.mxu0 0.0
    %875 = vmatprep.subr.mxu0 0.0
    %876 = vmatpush1.msra.mxu0 0.0
    %877 = vmatprep.subr.mxu0 0.0
    %878 = vmatpush1.msra.mxu0 0.0
    %879 = vmatprep.subr.mxu0 0.0
    %880 = vmatpush1.msra.mxu0 0.0
    %881 = vmatprep.subr.mxu0 0.0
    %882 = vmatpush1.msra.mxu0 0.0
    %883 = vmatprep.subr.mxu0 0.0
    %884 = vmatpush1.msra.mxu0 0.0
    %885 = vmatprep.subr.mxu0 0.0
    %886 = vmatpush1.msra.mxu0 0.0
    %887 = vmatprep.subr.mxu0 0.0
    %888 = vmatpush1.msra.mxu0 0.0
    %889 = vmatprep.subr.mxu0 0.0
    %890 = vmatpush1.msra.mxu0 0.0
    %891 = vmatprep.subr.mxu0 0.0
    %892 = vmatpush1.msra.mxu0 0.0
    %893 = vmatprep.subr.mxu0 0.0
    %894 = vmatpush1.msra.mxu0 0.0
    %895 = vmatprep.subr.mxu0 0.0
    %896 = vmatpush1.msra.mxu0 0.0
    %897 = vmatprep.subr.mxu0 0.0
    %898 = vmatpush1.msra.mxu0 0.0
    %899 = vmatprep.subr.mxu0 0.0
    %900 = vmatpush1.msra.mxu0 0.0
    %901 = vmatprep.subr.mxu0 0.0
    %902 = vmatpush1.msra.mxu0 0.0
    %903 = vmatprep.subr.mxu0 0.0
    %904 = vmatpush1.msra.mxu0 0.0
    %905 = vmatprep.subr.mxu0 0.0
    %906 = vmatpush1.msra.mxu0 0.0
    %907 = vmatprep.mubr.f32.mxu0 0.0
    %908 = vmatmul.mubr.f32.gmra.mrb[0].mxu0 %v841
    %v909 = vpop.f32.mrb[0].mxu0
    %v910 = vadd.f32 0.0, %v909
    %v911 = vpop.f32.mrb[0].mxu0
    %912 = vdwg.mxu0
    %v914 = vrot.slane %v910, 2
    %v916 = vadd.f32 %v361, %v914
    %v917 = vtanh.pop %v916
    %918 = vrot.lane.b32.xlu0 %v449, 32
    %v919 = vpop.permute.xlu0 %918
    %921 = vrot.lane.b32.xlu0 %v528, 64
    %v922 = vpop.permute.xlu0 %921
    %924 = vrot.lane.b32.xlu0 %v607, 96
    %v925 = vpop.permute.xlu0 %924
    %927 = vrot.lane.b32.xlu0 %v761, 32
    %v928 = vpop.permute.xlu0 %927
    %930 = vrot.lane.b32.xlu0 %v840, 64
    %v931 = vpop.permute.xlu0 %930
    %v934 = vrot.slane %v917, 6
    %935 = vrot.lane.b32.xlu0 %v934, 96
    %v936 = vpop.permute.xlu0 %935
    %v938 = vsel %vm369, %v368, %v919
    %vm939 = vcmask 523264
    %v940 = vsel %vm939, %v938, %v922
    %vm941 = vcmask 785408
    %v942 = vsel %vm941, %v940, %v925
    %v943 = vsel %vm369, %v681, %v928
    %v944 = vsel %vm939, %v943, %v931
    %v945 = vsel %vm941, %v944, %v936
    %v946 = vld [vmem:[%s4] sm:$0xff]
    %v947 = vld [vmem:[%s4 + $0x8] sm:$0xff]
    %v948 = vld [vmem:[%s4 + $0x10] sm:$0xff]
    %v949 = vld [vmem:[%s4 + $0x18] sm:$0xff]
    %v950 = vld [vmem:[%s4 + $0x20] sm:$0xff]
    %v951 = vld [vmem:[%s4 + $0x28] sm:$0xff]
    %v952 = vld [vmem:[%s4 + $0x30] sm:$0xff]
    %v953 = vld [vmem:[%s4 + $0x38] sm:$0xff]
    %v954 = vld [vmem:[%s4 + $0x40] sm:$0xff]
    %v955 = vld [vmem:[%s4 + $0x48] sm:$0xff]
    %v956 = vld [vmem:[%s4 + $0x50] sm:$0xff]
    %v957 = vld [vmem:[%s4 + $0x58] sm:$0xff]
    %v958 = vld [vmem:[%s4 + $0x60] sm:$0xff]
    %v959 = vld [vmem:[%s4 + $0x68] sm:$0xff]
    %v960 = vld [vmem:[%s4 + $0x70] sm:$0xff]
    %v961 = vld [vmem:[%s4 + $0x78] sm:$0xff]
    %v962 = vld [vmem:[%s4 + $0x80] sm:$0xff]
    %v963 = vld [vmem:[%s4 + $0x88] sm:$0xff]
    %v964 = vld [vmem:[%s4 + $0x90] sm:$0xff]
    %v965 = vld [vmem:[%s4 + $0x98] sm:$0xff]
    %v966 = vld [vmem:[%s4 + $0xa0] sm:$0xff]
    %v967 = vld [vmem:[%s4 + $0xa8] sm:$0xff]
    %v968 = vld [vmem:[%s4 + $0xb0] sm:$0xff]
    %v969 = vld [vmem:[%s4 + $0xb8] sm:$0xff]
    %v970 = vld [vmem:[%s4 + $0xc0] sm:$0xff]
    %v971 = vld [vmem:[%s4 + $0xc8] sm:$0xff]
    %v972 = vld [vmem:[%s4 + $0xd0] sm:$0xff]
    %v973 = vld [vmem:[%s4 + $0xd8] sm:$0xff]
    %v974 = vld [vmem:[%s4 + $0xe0] sm:$0xff]
    %v975 = vld [vmem:[%s4 + $0xe8] sm:$0xff]
    %v976 = vld [vmem:[%s4 + $0xf0] sm:$0xff]
    %v977 = vld [vmem:[%s4 + $0xf8] sm:$0xff]
    %v978 = vld [vmem:[%s5] sm:$0x1]
    %v980 = vlaneseq
    %v981 = vshrl.u32 %v980, 7
    %v982 = vsub.s32 0, %v981
    %v983 = vrot.slane %v978, %v982
    %985 = vmatprep.subr.mxu0 0.0
    %986 = vmatpush1.msra.mxu0 %v946
    %987 = vmatprep.subr.mxu0 0.0
    %988 = vmatpush1.msra.mxu0 %v947
    %989 = vmatprep.subr.mxu0 0.0
    %990 = vmatpush1.msra.mxu0 %v948
    %991 = vmatprep.subr.mxu0 0.0
    %992 = vmatpush1.msra.mxu0 %v949
    %993 = vmatprep.subr.mxu0 0.0
    %994 = vmatpush1.msra.mxu0 %v950
    %995 = vmatprep.subr.mxu0 0.0
    %996 = vmatpush1.msra.mxu0 %v951
    %997 = vmatprep.subr.mxu0 0.0
    %998 = vmatpush1.msra.mxu0 %v952
    %999 = vmatprep.subr.mxu0 0.0
    %1000 = vmatpush1.msra.mxu0 %v953
    %1001 = vmatprep.subr.mxu0 0.0
    %1002 = vmatpush1.msra.mxu0 %v954
    %1003 = vmatprep.subr.mxu0 0.0
    %1004 = vmatpush1.msra.mxu0 %v955
    %1005 = vmatprep.subr.mxu0 0.0
    %1006 = vmatpush1.msra.mxu0 %v956
    %1007 = vmatprep.subr.mxu0 0.0
    %1008 = vmatpush1.msra.mxu0 %v957
    %1009 = vmatprep.subr.mxu0 0.0
    %1010 = vmatpush1.msra.mxu0 %v958
    %1011 = vmatprep.subr.mxu0 0.0
    %1012 = vmatpush1.msra.mxu0 %v959
    %1013 = vmatprep.subr.mxu0 0.0
    %1014 = vmatpush1.msra.mxu0 %v960
    %1015 = vmatprep.subr.mxu0 0.0
    %1016 = vmatpush1.msra.mxu0 %v961
    %1017 = vmatprep.subr.mxu0 0.0
    %1018 = vmatpush1.msra.mxu0 %v962
    %1019 = vmatprep.subr.mxu0 0.0
    %1020 = vmatpush1.msra.mxu0 %v963
    %1021 = vmatprep.subr.mxu0 0.0
    %1022 = vmatpush1.msra.mxu0 %v964
    %1023 = vmatprep.subr.mxu0 0.0
    %1024 = vmatpush1.msra.mxu0 %v965
    %1025 = vmatprep.subr.mxu0 0.0
    %1026 = vmatpush1.msra.mxu0 %v966
    %1027 = vmatprep.subr.mxu0 0.0
    %1028 = vmatpush1.msra.mxu0 %v967
    %1029 = vmatprep.subr.mxu0 0.0
    %1030 = vmatpush1.msra.mxu0 %v968
    %1031 = vmatprep.subr.mxu0 0.0
    %1032 = vmatpush1.msra.mxu0 %v969
    %1033 = vmatprep.subr.mxu0 0.0
    %1034 = vmatpush1.msra.mxu0 %v970
    %1035 = vmatprep.subr.mxu0 0.0
    %1036 = vmatpush1.msra.mxu0 %v971
    %1037 = vmatprep.subr.mxu0 0.0
    %1038 = vmatpush1.msra.mxu0 %v972
    %1039 = vmatprep.subr.mxu0 0.0
    %1040 = vmatpush1.msra.mxu0 %v973
    %1041 = vmatprep.subr.mxu0 0.0
    %1042 = vmatpush1.msra.mxu0 %v974
    %1043 = vmatprep.subr.mxu0 0.0
    %1044 = vmatpush1.msra.mxu0 %v975
    %1045 = vmatprep.subr.mxu0 0.0
    %1046 = vmatpush1.msra.mxu0 %v976
    %1047 = vmatprep.subr.mxu0 0.0
    %1048 = vmatpush1.msra.mxu0 %v977
    %1049 = vmatprep.mubr.f32.mxu0 %v945
    %1050 = vmatmul.mubr.f32.gmra.mrb[0].mxu0 %v942
    %v1051 = vpop.f32.mrb[0].mxu0
    %v1052 = vadd.f32 %v983, %v1051
    %v1053 = vpop.f32.mrb[0].mxu0
    %1054 = vdwg.mxu0
    %vm1055 = vcmask 74752
    %1056 = vst.msk [vmem:[#allocation2] sm:$0x3] %vm1055, %v1052
    // Predicated region
    $region26: #{tpu_custom_call.1} parent=1 // pred_check
      _
    $region27: #{tpu_custom_call.1} parent=1 // pred_check_branch
      %1058 = sbr.rel (0) target = $region29
    $region28: #{tpu_custom_call.1} parent=1 // pred_region
      %s1060 = ssub.s32 32, 32
      %1061 = vsyncadd [#allocation3], %s1060
      %s1063 = sshll.u32 [#allocation2], 4
      %s1064 = int_to_ptr.vmem [resolvable:$true] %s1063
      %1066 = dma.vmem_to_hbm [thread:$0]  %s1064, 32, %s6, [#allocation3]
    $region29: #{tpu_custom_call.1} parent=1 // pred_fallthru
      _
    // Predicated region
    $region30: #{tpu_custom_call.1} parent=1 // pred_check
      _
    $region31: #{tpu_custom_call.1} parent=1 // pred_check_branch
      %1068 = sbr.rel (0) target = $region33
    $region32: #{tpu_custom_call.1} parent=1 // pred_region
      %1069 = dma.done [#allocation3], 32
    $region33: #{tpu_custom_call.1} parent=1 // pred_fallthru
      _
    %1070 = vsyncpa [#allocation3], 1

</llo_original>
